<compile_context>
chip_gen: v7x
topology: tpu7x:2x2x1
jax: 0.10.0
libtpu: 0.0.40
codegen_flags: <defaults>
</compile_context>

<pallas_src>
import functools

import jax
import jax.numpy as jnp
from jax.experimental import pallas as pl
from jax.experimental.pallas import tpu as pltpu


def _round_up(x, m):
    return ((x + m - 1) // m) * m


def _vmem_budget_bytes():
    """Generation-aware scoped-VMEM budget with headroom for compiler scratch."""
    cap = 64 << 20  # conservative default = v7x physical VMEM per TensorCore
    try:
        cap = int(getattr(pltpu.get_tpu_info(), "vmem_capacity_bytes", cap)) or cap
    except Exception:
        pass
    # ~40 MiB on v7x (64 MiB physical), ~80 MiB on v5e/v6e (128 MiB physical).
    return int(min(cap * 5 // 8, 96 << 20))


def _choose_tiling(batch, dim, itemsize, vmem_budget):
    """Pick (tile_b, chunk_d) from D, the input dtype and the VMEM budget."""
    d_pad = _round_up(dim, 128)          # VMEM / vreg tiles are 128-lane padded

    def max_rows(dc_pad):
        # 3 inputs x 2 pipeline buffers (input dtype) + ~5 f32 tile temporaries
        # (casts + diffs/squares) + 2 lane-padded (tb, 1) f32 accumulators.
        per_row = 3 * 2 * dc_pad * itemsize + 5 * dc_pad * 4 + 2 * 128 * 4
        return max(((vmem_budget // per_row) // 8) * 8, 8)

    # Prefer a single full-D chunk; chunk D only when that would force a tiny
    # batch tile (bounds live f32 temporaries -> keeps tb large on v7x's 64 MiB).
    dc_pad = d_pad
    while max_rows(dc_pad) < 256 and dc_pad > 1024:
        dc_pad = _round_up(pl.cdiv(dc_pad, 2), 128)
    chunk_d = dim if dc_pad >= d_pad else dc_pad

    b_pad = _round_up(batch, 8)
    tile_b = min(max_rows(dc_pad), 4096, b_pad)

    # v7x megacore: aim for >=4 batch tiles on the "parallel" axis so both
    # TensorCores stream, but never shrink a tile below ~1 MiB of per-step input
    # traffic (per-step overhead would dominate; harmless on 1-TC v5e/v6e).
    split_tb = max(_round_up(pl.cdiv(b_pad, 4), 8), 8)
    if 3 * split_tb * dc_pad * itemsize >= (1 << 20):
        tile_b = min(tile_b, split_tb)

    return max(tile_b, 8), chunk_d


def _triplet_tile_kernel(anc_ref, pos_ref, neg_ref, psum_ref, ap_acc, an_acc, *,
                         margin, eps, batch, dim, tile_b, chunk_d):
    i = pl.program_id(0)          # batch tile ("parallel")
    j = pl.program_id(1)          # D chunk   ("arbitrary", reduction axis, last)

    @pl.when(j == 0)
    def _():
        ap_acc[...] = jnp.zeros_like(ap_acc)
        an_acc[...] = jnp.zeros_like(an_acc)

    # Compute in f32 (v5e has no bf16 VPU; compute hides under the DMA bound).
    anc = anc_ref[...].astype(jnp.float32)
    pos = pos_ref[...].astype(jnp.float32)
    neg = neg_ref[...].astype(jnp.float32)

    # F.pairwise_distance adds eps elementwise to the difference before the norm.
    diff_ap = anc - pos + eps
    diff_an = anc - neg + eps
    sq_ap = diff_ap * diff_ap
    sq_an = diff_an * diff_an

    # Mask padded columns of a ragged last D chunk (select, so inf/NaN garbage in
    # the padded region cannot poison the accumulators).
    if dim % chunk_d != 0:
        col = jax.lax.broadcasted_iota(jnp.int32, sq_ap.shape, 1)
        col_ok = (col + j * chunk_d) < dim
        sq_ap = jnp.where(col_ok, sq_ap, 0.0)
        sq_an = jnp.where(col_ok, sq_an, 0.0)

    ap_acc[...] += jnp.sum(sq_ap, axis=-1, keepdims=True)   # (tb, 1)
    an_acc[...] += jnp.sum(sq_an, axis=-1, keepdims=True)   # (tb, 1)

    @pl.when(j == pl.num_programs(1) - 1)
    def _():
        d_ap = jnp.sqrt(ap_acc[...])
        d_an = jnp.sqrt(an_acc[...])
        # MarginRankingLoss(d_an, d_ap, target=1): max(0, -(d_an - d_ap) + margin)
        hinge = jnp.maximum(d_ap - d_an + margin, 0.0)
        # Drop padded rows of a ragged last batch tile.  NOTE: keep this a select
        # (jnp.where), NOT `hinge * mask` -- padded rows may contain inf/NaN and
        # NaN * 0 would poison the sum.
        row = jax.lax.broadcasted_iota(jnp.int32, hinge.shape, 0)
        row_ok = (row + i * tile_b) < batch
        hinge = jnp.where(row_ok, hinge, 0.0)
        tile_sum = jnp.sum(hinge)
        psum_ref[...] = jnp.broadcast_to(tile_sum, psum_ref.shape).astype(jnp.float32)


def triplet_loss(anc, pos, neg, margin=2.0, eps=1e-6, tile_b=None, chunk_d=None):
    """Scalar float32 triplet loss.  anc/pos/neg: (B, D) arrays (f32 or bf16)."""
    assert anc.shape == pos.shape == neg.shape and anc.ndim == 2
    B, D = anc.shape
    itemsize = jnp.dtype(anc.dtype).itemsize

    vmem_budget = _vmem_budget_bytes()
    auto_tb, auto_dc = _choose_tiling(B, D, itemsize, vmem_budget)

    tb = auto_tb if tile_b is None else max(
        8, _round_up(min(int(tile_b), _round_up(B, 8)), 8))
    if chunk_d is None:
        dc = auto_dc
    else:
        dc = D if int(chunk_d) >= D else _round_up(int(chunk_d), 128)

    num_b_tiles = pl.cdiv(B, tb)
    num_d_chunks = pl.cdiv(D, dc)

    # Scoped-VMEM request: budgeted footprint (incl. f32 temporaries and lane
    # padding) + slack, capped at the generation-aware budget.
    dc_pad = _round_up(dc, 128)
    est_bytes = (3 * 2 * tb * dc_pad * itemsize   # double-buffered input slabs
                 + 5 * tb * dc_pad * 4            # f32 tile temporaries
                 + 2 * tb * 128 * 4               # (tb,1) accumulators, lane-padded
                 + 2 * 2 * 128 * 4)               # partial-sum output buffers
    vmem_limit = int(min(max(est_bytes + (2 << 20), 16 << 20), vmem_budget))

    kernel = functools.partial(
        _triplet_tile_kernel, margin=float(margin), eps=float(eps),
        batch=int(B), dim=int(D), tile_b=int(tb), chunk_d=int(dc))

    cost = pl.CostEstimate(
        flops=8 * B * D + 8 * B,
        transcendentals=2 * B,
        bytes_accessed=3 * B * D * itemsize + num_b_tiles * 128 * 4)

    # TODO(synk): sweep pipeline_mode=pl.Buffered(3) on the input BlockSpecs for
    # the tiny-tile regime (small B*D) once measured on hardware.
    partial_sums = pl.pallas_call(
        kernel,
        out_shape=jax.ShapeDtypeStruct((num_b_tiles, 128), jnp.float32),
        grid=(num_b_tiles, num_d_chunks),
        in_specs=[
            pl.BlockSpec((tb, dc), lambda i, j: (i, j)),
            pl.BlockSpec((tb, dc), lambda i, j: (i, j)),
            pl.BlockSpec((tb, dc), lambda i, j: (i, j)),
        ],
        out_specs=pl.BlockSpec((1, 128), lambda i, j: (i, 0)),
        scratch_shapes=[
            pltpu.VMEM((tb, 1), jnp.float32),   # sum-of-squares (anc, pos)
            pltpu.VMEM((tb, 1), jnp.float32),   # sum-of-squares (anc, neg)
        ],
        compiler_params=pltpu.CompilerParams(
            dimension_semantics=("parallel", "arbitrary"),
            vmem_limit_bytes=vmem_limit,
        ),
        cost_estimate=cost,
    )(anc, pos, neg)

    return jnp.sum(partial_sums[:, 0]) / jnp.float32(B)


def _reference(anc, pos, neg, margin=2.0, eps=1e-6):
    a = anc.astype(jnp.float32)
    p = pos.astype(jnp.float32)
    n = neg.astype(jnp.float32)
    d_ap = jnp.sqrt(jnp.sum((a - p + eps) ** 2, axis=-1))
    d_an = jnp.sqrt(jnp.sum((a - n + eps) ** 2, axis=-1))
    return jnp.mean(jnp.maximum(d_ap - d_an + margin, 0.0))


if __name__ == "__main__":
    key = jax.random.PRNGKey(0)
    k1, k2, k3 = jax.random.split(key, 3)

    # Ragged batch + narrow embedding (exercises masked last batch tile & 128-lane padding).
    B, D = 50, 32
    anc = jax.random.normal(k1, (B, D), dtype=jnp.float32)
    pos = jax.random.normal(k2, (B, D), dtype=jnp.float32)
    neg = jax.random.normal(k3, (B, D), dtype=jnp.float32)
    ref = _reference(anc, pos, neg, margin=2.0)

    # Auto-tiled path (tile derived from D/dtype/VMEM capacity).
    out = jax.block_until_ready(triplet_loss(anc, pos, neg, margin=2.0))
    assert jnp.allclose(out, ref, atol=1e-5, rtol=1e-5), (out, ref)

    # Forced multi-batch-tile path (ragged last tile, row masking).
    out2 = jax.block_until_ready(triplet_loss(anc, pos, neg, margin=2.0, tile_b=16))
    assert jnp.allclose(out2, ref, atol=1e-5, rtol=1e-5), (out2, ref)

    # Forced D-chunked path with a ragged last D chunk (column masking + accumulators).
    B2, D2 = 24, 320
    a2 = jax.random.normal(k1, (B2, D2), dtype=jnp.float32)
    p2 = jax.random.normal(k2, (B2, D2), dtype=jnp.float32)
    n2 = jax.random.normal(k3, (B2, D2), dtype=jnp.float32)
    ref2 = _reference(a2, p2, n2, margin=2.0)
    out3 = jax.block_until_ready(
        triplet_loss(a2, p2, n2, margin=2.0, tile_b=16, chunk_d=128))
    assert jnp.allclose(out3, ref2, atol=1e-4, rtol=1e-4), (out3, ref2)

    print("KERNEL_OK")
</pallas_src>

<mosaic_0001>
module attributes {stable_mosaic.version = 11 : i64} {
  func.func @_triplet_tile_kernel(%arg0: i32, %arg1: i32, %arg2: memref<56x32xf32, #tpu.memory_space<vmem>>, %arg3: memref<56x32xf32, #tpu.memory_space<vmem>>, %arg4: memref<56x32xf32, #tpu.memory_space<vmem>>, %arg5: memref<1x128xf32, #tpu.memory_space<vmem>>, %arg6: memref<56x1xf32, #tpu.memory_space<vmem>>, %arg7: memref<56x1xf32, #tpu.memory_space<vmem>>) attributes {dimension_semantics = [#tpu.dimension_semantics<parallel>, #tpu.dimension_semantics<arbitrary>], iteration_bounds = array<i64: 1, 1>, scalar_prefetch = 0 : i64, scratch_operands = 2 : i64, tpu.core_type = #tpu.core_type<tc>, window_params = [{transform_indices = @transform_0, window_bounds = array<i64: 56, 32>}, {transform_indices = @transform_1, window_bounds = array<i64: 56, 32>}, {transform_indices = @transform_2, window_bounds = array<i64: 56, 32>}, {transform_indices = @transform_3, window_bounds = array<i64: 1, 128>}]} {
    %c0_i32 = arith.constant 0 : i32
    %0 = arith.cmpi eq, %arg1, %c0_i32 : i32
    %1 = arith.extui %0 : i1 to i32
    %c0_i32_0 = arith.constant 0 : i32
    %2 = arith.cmpi ne, %1, %c0_i32_0 : i32
    scf.if %2 {
      %cst_19 = arith.constant 0.000000e+00 : f32
      %27 = vector.broadcast %cst_19 : f32 to vector<56x1xf32>
      %c0_20 = arith.constant 0 : index
      %c0_21 = arith.constant 0 : index
      %28 = vector.load %arg6[%c0_20, %c0_21] : memref<56x1xf32, #tpu.memory_space<vmem>>, vector<56x1xf32>
      tpu.vector_store %arg6[%c0_20, %c0_21], %27 {strides = array<i32>} : memref<56x1xf32, #tpu.memory_space<vmem>>, vector<56x1xf32>,
      %cst_22 = arith.constant 0.000000e+00 : f32
      %29 = vector.broadcast %cst_22 : f32 to vector<56x1xf32>
      %c0_23 = arith.constant 0 : index
      %c0_24 = arith.constant 0 : index
      %30 = vector.load %arg7[%c0_23, %c0_24] : memref<56x1xf32, #tpu.memory_space<vmem>>, vector<56x1xf32>
      tpu.vector_store %arg7[%c0_23, %c0_24], %29 {strides = array<i32>} : memref<56x1xf32, #tpu.memory_space<vmem>>, vector<56x1xf32>,
    } else {
    }
    %c0 = arith.constant 0 : index
    %c0_1 = arith.constant 0 : index
    %3 = vector.load %arg2[%c0, %c0_1] : memref<56x32xf32, #tpu.memory_space<vmem>>, vector<56x32xf32>
    %c0_2 = arith.constant 0 : index
    %c0_3 = arith.constant 0 : index
    %4 = vector.load %arg3[%c0_2, %c0_3] : memref<56x32xf32, #tpu.memory_space<vmem>>, vector<56x32xf32>
    %c0_4 = arith.constant 0 : index
    %c0_5 = arith.constant 0 : index
    %5 = vector.load %arg4[%c0_4, %c0_5] : memref<56x32xf32, #tpu.memory_space<vmem>>, vector<56x32xf32>
    %6 = arith.subf %3, %4 : vector<56x32xf32>
    %cst = arith.constant 9.99999997E-7 : f32
    %7 = vector.broadcast %cst : f32 to vector<56x32xf32>
    %8 = arith.addf %6, %7 : vector<56x32xf32>
    %9 = arith.subf %3, %5 : vector<56x32xf32>
    %cst_6 = arith.constant 9.99999997E-7 : f32
    %10 = vector.broadcast %cst_6 : f32 to vector<56x32xf32>
    %11 = arith.addf %9, %10 : vector<56x32xf32>
    %12 = arith.mulf %8, %8 : vector<56x32xf32>
    %13 = arith.mulf %11, %11 : vector<56x32xf32>
    %c0_7 = arith.constant 0 : index
    %c0_8 = arith.constant 0 : index
    %14 = vector.load %arg6[%c0_7, %c0_8] : memref<56x1xf32, #tpu.memory_space<vmem>>, vector<56x1xf32>
    %cst_9 = arith.constant dense<0.000000e+00> : vector<56xf32>
    %15 = vector.multi_reduction <add>, %12, %cst_9 [1] : vector<56x32xf32> to vector<56xf32>
    %16 = vector.shape_cast %15 : vector<56xf32> to vector<56x1xf32>
    %17 = arith.addf %14, %16 : vector<56x1xf32>
    %c0_10 = arith.constant 0 : index
    %c0_11 = arith.constant 0 : index
    %18 = vector.load %arg6[%c0_10, %c0_11] : memref<56x1xf32, #tpu.memory_space<vmem>>, vector<56x1xf32>
    tpu.vector_store %arg6[%c0_10, %c0_11], %17 {strides = array<i32>} : memref<56x1xf32, #tpu.memory_space<vmem>>, vector<56x1xf32>,
    %c0_12 = arith.constant 0 : index
    %c0_13 = arith.constant 0 : index
    %19 = vector.load %arg7[%c0_12, %c0_13] : memref<56x1xf32, #tpu.memory_space<vmem>>, vector<56x1xf32>
    %cst_14 = arith.constant dense<0.000000e+00> : vector<56xf32>
    %20 = vector.multi_reduction <add>, %13, %cst_14 [1] : vector<56x32xf32> to vector<56xf32>
    %21 = vector.shape_cast %20 : vector<56xf32> to vector<56x1xf32>
    %22 = arith.addf %19, %21 : vector<56x1xf32>
    %c0_15 = arith.constant 0 : index
    %c0_16 = arith.constant 0 : index
    %23 = vector.load %arg7[%c0_15, %c0_16] : memref<56x1xf32, #tpu.memory_space<vmem>>, vector<56x1xf32>
    tpu.vector_store %arg7[%c0_15, %c0_16], %22 {strides = array<i32>} : memref<56x1xf32, #tpu.memory_space<vmem>>, vector<56x1xf32>,
    %c0_i32_17 = arith.constant 0 : i32
    %24 = arith.cmpi eq, %arg1, %c0_i32_17 : i32
    %25 = arith.extui %24 : i1 to i32
    %c0_i32_18 = arith.constant 0 : i32
    %26 = arith.cmpi ne, %25, %c0_i32_18 : i32
    scf.if %26 {
      %c0_19 = arith.constant 0 : index
      %c0_20 = arith.constant 0 : index
      %27 = vector.load %arg6[%c0_19, %c0_20] : memref<56x1xf32, #tpu.memory_space<vmem>>, vector<56x1xf32>
      %28 = math.sqrt %27 : vector<56x1xf32>
      %c0_21 = arith.constant 0 : index
      %c0_22 = arith.constant 0 : index
      %29 = vector.load %arg7[%c0_21, %c0_22] : memref<56x1xf32, #tpu.memory_space<vmem>>, vector<56x1xf32>
      %30 = math.sqrt %29 : vector<56x1xf32>
      %31 = arith.subf %28, %30 : vector<56x1xf32>
      %cst_23 = arith.constant 2.000000e+00 : f32
      %32 = vector.broadcast %cst_23 : f32 to vector<56x1xf32>
      %33 = arith.addf %31, %32 : vector<56x1xf32>
      %cst_24 = arith.constant 0.000000e+00 : f32
      %34 = vector.broadcast %cst_24 : f32 to vector<56x1xf32>
      %35 = arith.maximumf %33, %34 : vector<56x1xf32>
      %36 = tpu.iota {dimensions = array<i32: 0>} : vector<56x1xi32>
      %c56_i32 = arith.constant 56 : i32
      %37 = arith.muli %arg0, %c56_i32 : i32
      %38 = vector.broadcast %37 : i32 to vector<56x1xi32>
      %39 = arith.addi %36, %38 : vector<56x1xi32>
      %c50_i32 = arith.constant 50 : i32
      %40 = vector.broadcast %c50_i32 : i32 to vector<56x1xi32>
      %41 = arith.cmpi slt, %39, %40 : vector<56x1xi32>
      %cst_25 = arith.constant 0.000000e+00 : f32
      %42 = vector.broadcast %cst_25 : f32 to vector<56x1xf32>
      %43 = arith.select %41, %35, %42 : vector<56x1xi1>, vector<56x1xf32>
      %44 = vector.shape_cast %43 : vector<56x1xf32> to vector<1x56x1xf32>
      %cst_26 = arith.constant dense<0.000000e+00> : vector<1xf32>
      %45 = vector.multi_reduction <add>, %44, %cst_26 [1, 2] : vector<1x56x1xf32> to vector<1xf32>
      %46 = vector.shape_cast %45 : vector<1xf32> to vector<1x1x1xf32>
      %47 = vector.extract %46[0, 0, 0] : f32 from vector<1x1x1xf32>
      %48 = vector.broadcast %47 : f32 to vector<1x128xf32>
      %c0_27 = arith.constant 0 : index
      %c0_28 = arith.constant 0 : index
      %49 = vector.load %arg5[%c0_27, %c0_28] : memref<1x128xf32, #tpu.memory_space<vmem>>, vector<1x128xf32>
      tpu.vector_store %arg5[%c0_27, %c0_28], %48 {strides = array<i32>} : memref<1x128xf32, #tpu.memory_space<vmem>>, vector<1x128xf32>,
    } else {
    }
    return
  }
  func.func @transform_0(%arg0: i32, %arg1: i32) -> (i32, i32) {
    %c0_i32 = arith.constant 0 : i32
    return %arg0, %arg1 : i32, i32
  }
  func.func @transform_1(%arg0: i32, %arg1: i32) -> (i32, i32) {
    %c0_i32 = arith.constant 0 : i32
    return %arg0, %arg1 : i32, i32
  }
  func.func @transform_2(%arg0: i32, %arg1: i32) -> (i32, i32) {
    %c0_i32 = arith.constant 0 : i32
    return %arg0, %arg1 : i32, i32
  }
  func.func @transform_3(%arg0: i32, %arg1: i32) -> (i32, i32) {
    %c0_i32 = arith.constant 0 : i32
    %c0_i32_0 = arith.constant 0 : i32
    return %arg0, %c0_i32 : i32, i32
  }
}

</mosaic_0001>

<llo_original>
// kernel: tpu_custom_call.1
$region0: #{tpu_custom_call.1}
  #allocation0 [shape = 'u32[]', space=smem, size = 0x4, offset = 0x4, fixed_abs, tag = 'smem constant byte address 0x4 - core index']
  #allocation1 [shape = 'u32[144,128]{1,0:T(1,128)}', space=vmem, size = 0x12000, scoped, tag = 'internal scratch']
  #allocation2 [shape = 'f32[56,1]{1,0:T(8,128)}', space=vmem, size = 0x7000, scoped, tag = 'scratch operand']
  #allocation3 [shape = 'f32[56,1]{1,0:T(8,128)}', space=vmem, size = 0x7000, scoped, tag = 'scratch operand']
  %s0 = inlined_call_operand.vmem [shape: f32[50,32], index: 0, kind: input, shape index: {}]
  %s1 = inlined_call_operand.vmem [shape: f32[50,32], index: 1, kind: input, shape index: {}]
  %s2 = inlined_call_operand.vmem [shape: f32[50,32], index: 2, kind: input, shape index: {}]
  %s3 = inlined_call_operand.hbm [shape: f32[1,128], index: 3, kind: output, shape index: {}]
  %s4 = sld [smem:[#allocation0]]
  $region30: #{tpu_custom_call.1} parent=0
    _
  %s6 = ssub.s32 1, %s4
  %s7 = scalar_select 0, %s6, %s4
  $region1: #{tpu_custom_call.1} parent=0
    #allocation4 [shape = 'u8[512]{0}', space=vmem, size = 0x400, scoped, tag = 'output window, operand 0, single buffered']
    #allocation5 [shape = 's32[1]{0}', space=sflag, size = 0x4, scoped, tag = 'scoped memory for tpu_custom_call.1']
    %8 = vsyncpa [#allocation5], 0
    // Predicated region
    $region2: #{tpu_custom_call.1} parent=1 // pred_check
      _
    $region3: #{tpu_custom_call.1} parent=1 // pred_check_branch
      %10 = sbr.rel (0) target = $region5
    $region4: #{tpu_custom_call.1} parent=1 // pred_region
      _
    $region5: #{tpu_custom_call.1} parent=1 // pred_fallthru
      _
    // Predicated region
    $region6: #{tpu_custom_call.1} parent=1 // pred_check
      _
    $region7: #{tpu_custom_call.1} parent=1 // pred_check_branch
      %12 = sbr.rel (0) target = $region9
    $region8: #{tpu_custom_call.1} parent=1 // pred_region
      _
    $region9: #{tpu_custom_call.1} parent=1 // pred_fallthru
      _
    // Predicated region
    $region10: #{tpu_custom_call.1} parent=1 // pred_check
      _
    $region11: #{tpu_custom_call.1} parent=1 // pred_check_branch
      %14 = sbr.rel (0) target = $region13
    $region12: #{tpu_custom_call.1} parent=1 // pred_region
      _
    $region13: #{tpu_custom_call.1} parent=1 // pred_fallthru
      _
    %p15 = scmp.eq.s32.totalorder 0, 0
    // Predicated region
    $region14: #{tpu_custom_call.1} parent=1 // pred_check
      %p16 = pneg %p15
    $region15: #{tpu_custom_call.1} parent=1 // pred_check_branch
      %18 = sbr.rel (%p16) target = $region17
    $region16: #{tpu_custom_call.1} parent=1 // pred_region
      %vm19 = vcmask 7168
      %20 = vst.msk [vmem:[#allocation2] sm:$0xff] %vm19, 0.0
      %21 = vst.msk [vmem:[#allocation2 + $0x8] sm:$0xff] %vm19, 0.0
      %22 = vst.msk [vmem:[#allocation2 + $0x10] sm:$0xff] %vm19, 0.0
      %23 = vst.msk [vmem:[#allocation2 + $0x18] sm:$0xff] %vm19, 0.0
      %24 = vst.msk [vmem:[#allocation2 + $0x20] sm:$0xff] %vm19, 0.0
      %25 = vst.msk [vmem:[#allocation2 + $0x28] sm:$0xff] %vm19, 0.0
      %26 = vst.msk [vmem:[#allocation2 + $0x30] sm:$0xff] %vm19, 0.0
      %27 = vst.msk [vmem:[#allocation3] sm:$0xff] %vm19, 0.0
      %28 = vst.msk [vmem:[#allocation3 + $0x8] sm:$0xff] %vm19, 0.0
      %29 = vst.msk [vmem:[#allocation3 + $0x10] sm:$0xff] %vm19, 0.0
      %30 = vst.msk [vmem:[#allocation3 + $0x18] sm:$0xff] %vm19, 0.0
      %31 = vst.msk [vmem:[#allocation3 + $0x20] sm:$0xff] %vm19, 0.0
      %32 = vst.msk [vmem:[#allocation3 + $0x28] sm:$0xff] %vm19, 0.0
      %33 = vst.msk [vmem:[#allocation3 + $0x30] sm:$0xff] %vm19, 0.0
    $region17: #{tpu_custom_call.1} parent=1 // pred_fallthru
      _
    %v34 = vld [vmem:[%s0] sm:$0xff]
    %v35 = vld [vmem:[%s0 + $0x8] sm:$0xff]
    %v36 = vld [vmem:[%s0 + $0x10] sm:$0xff]
    %v37 = vld [vmem:[%s0 + $0x18] sm:$0xff]
    %v38 = vld [vmem:[%s0 + $0x20] sm:$0xff]
    %v39 = vld [vmem:[%s0 + $0x28] sm:$0xff]
    %v40 = vld [vmem:[%s0 + $0x30] sm:$0xff]
    %v41 = vld [vmem:[%s1] sm:$0xff]
    %v42 = vld [vmem:[%s1 + $0x8] sm:$0xff]
    %v43 = vld [vmem:[%s1 + $0x10] sm:$0xff]
    %v44 = vld [vmem:[%s1 + $0x18] sm:$0xff]
    %v45 = vld [vmem:[%s1 + $0x20] sm:$0xff]
    %v46 = vld [vmem:[%s1 + $0x28] sm:$0xff]
    %v47 = vld [vmem:[%s1 + $0x30] sm:$0xff]
    %v48 = vld [vmem:[%s2] sm:$0xff]
    %v49 = vld [vmem:[%s2 + $0x8] sm:$0xff]
    %v50 = vld [vmem:[%s2 + $0x10] sm:$0xff]
    %v51 = vld [vmem:[%s2 + $0x18] sm:$0xff]
    %v52 = vld [vmem:[%s2 + $0x20] sm:$0xff]
    %v53 = vld [vmem:[%s2 + $0x28] sm:$0xff]
    %v54 = vld [vmem:[%s2 + $0x30] sm:$0xff]
    %v55 = vsub.f32 %v34, %v41
    %v56 = vsub.f32 %v35, %v42
    %v57 = vsub.f32 %v36, %v43
    %v58 = vsub.f32 %v37, %v44
    %v59 = vsub.f32 %v38, %v45
    %v60 = vsub.f32 %v39, %v46
    %v61 = vsub.f32 %v40, %v47
    %v62 = vadd.f32 %v55, 1e-06
    %v63 = vadd.f32 %v56, 1e-06
    %v64 = vadd.f32 %v57, 1e-06
    %v65 = vadd.f32 %v58, 1e-06
    %v66 = vadd.f32 %v59, 1e-06
    %v67 = vadd.f32 %v60, 1e-06
    %v68 = vadd.f32 %v61, 1e-06
    %v69 = vsub.f32 %v34, %v48
    %v70 = vsub.f32 %v35, %v49
    %v71 = vsub.f32 %v36, %v50
    %v72 = vsub.f32 %v37, %v51
    %v73 = vsub.f32 %v38, %v52
    %v74 = vsub.f32 %v39, %v53
    %v75 = vsub.f32 %v40, %v54
    %v76 = vadd.f32 %v69, 1e-06
    %v77 = vadd.f32 %v70, 1e-06
    %v78 = vadd.f32 %v71, 1e-06
    %v79 = vadd.f32 %v72, 1e-06
    %v80 = vadd.f32 %v73, 1e-06
    %v81 = vadd.f32 %v74, 1e-06
    %v82 = vadd.f32 %v75, 1e-06
    %v83 = vmul.f32 %v62, %v62
    %v84 = vmul.f32 %v63, %v63
    %v85 = vmul.f32 %v64, %v64
    %v86 = vmul.f32 %v65, %v65
    %v87 = vmul.f32 %v66, %v66
    %v88 = vmul.f32 %v67, %v67
    %v89 = vmul.f32 %v68, %v68
    %v90 = vmul.f32 %v76, %v76
    %v91 = vmul.f32 %v77, %v77
    %v92 = vmul.f32 %v78, %v78
    %v93 = vmul.f32 %v79, %v79
    %v94 = vmul.f32 %v80, %v80
    %v95 = vmul.f32 %v81, %v81
    %v96 = vmul.f32 %v82, %v82
    %v97 = vld [vmem:[#allocation2] sm:$0xff]
    %v98 = vld [vmem:[#allocation2 + $0x8] sm:$0xff]
    %v99 = vld [vmem:[#allocation2 + $0x10] sm:$0xff]
    %v100 = vld [vmem:[#allocation2 + $0x18] sm:$0xff]
    %v101 = vld [vmem:[#allocation2 + $0x20] sm:$0xff]
    %v102 = vld [vmem:[#allocation2 + $0x28] sm:$0xff]
    %v103 = vld [vmem:[#allocation2 + $0x30] sm:$0xff]
    %vm104 = vcmask 261120
    %v105 = vsel %vm104, %v83, 0.0
    %106 = vadd.xlane.f32.xlu0 %v105
    %v107 = vpop.xlane.xlu0 %106
    %v108 = vsel %vm104, %v84, 0.0
    %109 = vadd.xlane.f32.xlu0 %v108
    %v110 = vpop.xlane.xlu0 %109
    %v111 = vsel %vm104, %v85, 0.0
    %112 = vadd.xlane.f32.xlu0 %v111
    %v113 = vpop.xlane.xlu0 %112
    %v114 = vsel %vm104, %v86, 0.0
    %115 = vadd.xlane.f32.xlu0 %v114
    %v116 = vpop.xlane.xlu0 %115
    %v117 = vsel %vm104, %v87, 0.0
    %118 = vadd.xlane.f32.xlu0 %v117
    %v119 = vpop.xlane.xlu0 %118
    %v120 = vsel %vm104, %v88, 0.0
    %121 = vadd.xlane.f32.xlu0 %v120
    %v122 = vpop.xlane.xlu0 %121
    %v123 = vsel %vm104, %v89, 0.0
    %124 = vadd.xlane.f32.xlu0 %v123
    %v125 = vpop.xlane.xlu0 %124
    %v126 = vadd.f32 %v97, %v107
    %v127 = vadd.f32 %v98, %v110
    %v128 = vadd.f32 %v99, %v113
    %v129 = vadd.f32 %v100, %v116
    %v130 = vadd.f32 %v101, %v119
    %v131 = vadd.f32 %v102, %v122
    %v132 = vadd.f32 %v103, %v125
    %vm133 = vcmask 7168
    %134 = vst.msk [vmem:[#allocation2] sm:$0xff] %vm133, %v126
    %135 = vst.msk [vmem:[#allocation2 + $0x8] sm:$0xff] %vm133, %v127
    %136 = vst.msk [vmem:[#allocation2 + $0x10] sm:$0xff] %vm133, %v128
    %137 = vst.msk [vmem:[#allocation2 + $0x18] sm:$0xff] %vm133, %v129
    %138 = vst.msk [vmem:[#allocation2 + $0x20] sm:$0xff] %vm133, %v130
    %139 = vst.msk [vmem:[#allocation2 + $0x28] sm:$0xff] %vm133, %v131
    %140 = vst.msk [vmem:[#allocation2 + $0x30] sm:$0xff] %vm133, %v132
    %v141 = vld [vmem:[#allocation3] sm:$0xff]
    %v142 = vld [vmem:[#allocation3 + $0x8] sm:$0xff]
    %v143 = vld [vmem:[#allocation3 + $0x10] sm:$0xff]
    %v144 = vld [vmem:[#allocation3 + $0x18] sm:$0xff]
    %v145 = vld [vmem:[#allocation3 + $0x20] sm:$0xff]
    %v146 = vld [vmem:[#allocation3 + $0x28] sm:$0xff]
    %v147 = vld [vmem:[#allocation3 + $0x30] sm:$0xff]
    %v148 = vsel %vm104, %v90, 0.0
    %149 = vadd.xlane.f32.xlu0 %v148
    %v150 = vpop.xlane.xlu0 %149
    %v151 = vsel %vm104, %v91, 0.0
    %152 = vadd.xlane.f32.xlu0 %v151
    %v153 = vpop.xlane.xlu0 %152
    %v154 = vsel %vm104, %v92, 0.0
    %155 = vadd.xlane.f32.xlu0 %v154
    %v156 = vpop.xlane.xlu0 %155
    %v157 = vsel %vm104, %v93, 0.0
    %158 = vadd.xlane.f32.xlu0 %v157
    %v159 = vpop.xlane.xlu0 %158
    %v160 = vsel %vm104, %v94, 0.0
    %161 = vadd.xlane.f32.xlu0 %v160
    %v162 = vpop.xlane.xlu0 %161
    %v163 = vsel %vm104, %v95, 0.0
    %164 = vadd.xlane.f32.xlu0 %v163
    %v165 = vpop.xlane.xlu0 %164
    %v166 = vsel %vm104, %v96, 0.0
    %167 = vadd.xlane.f32.xlu0 %v166
    %v168 = vpop.xlane.xlu0 %167
    %v169 = vadd.f32 %v141, %v150
    %v170 = vadd.f32 %v142, %v153
    %v171 = vadd.f32 %v143, %v156
    %v172 = vadd.f32 %v144, %v159
    %v173 = vadd.f32 %v145, %v162
    %v174 = vadd.f32 %v146, %v165
    %v175 = vadd.f32 %v147, %v168
    %176 = vst.msk [vmem:[#allocation3] sm:$0xff] %vm133, %v169
    %177 = vst.msk [vmem:[#allocation3 + $0x8] sm:$0xff] %vm133, %v170
    %178 = vst.msk [vmem:[#allocation3 + $0x10] sm:$0xff] %vm133, %v171
    %179 = vst.msk [vmem:[#allocation3 + $0x18] sm:$0xff] %vm133, %v172
    %180 = vst.msk [vmem:[#allocation3 + $0x20] sm:$0xff] %vm133, %v173
    %181 = vst.msk [vmem:[#allocation3 + $0x28] sm:$0xff] %vm133, %v174
    %182 = vst.msk [vmem:[#allocation3 + $0x30] sm:$0xff] %vm133, %v175
    // Predicated region
    $region18: #{tpu_custom_call.1} parent=1 // pred_check
      %p183 = pneg %p15
    $region19: #{tpu_custom_call.1} parent=1 // pred_check_branch
      %185 = sbr.rel (%p183) target = $region21
    $region20: #{tpu_custom_call.1} parent=1 // pred_region
      %v186 = vld [vmem:[#allocation2] sm:$0xff]
      %v187 = vld [vmem:[#allocation2 + $0x8] sm:$0xff]
      %v188 = vld [vmem:[#allocation2 + $0x10] sm:$0xff]
      %v189 = vld [vmem:[#allocation2 + $0x18] sm:$0xff]
      %v190 = vld [vmem:[#allocation2 + $0x20] sm:$0xff]
      %v191 = vld [vmem:[#allocation2 + $0x28] sm:$0xff]
      %v192 = vld [vmem:[#allocation2 + $0x30] sm:$0xff]
      %v193 = vrsqrt.pop %v186
      %v194 = vmul.f32 %v186, %v193
      %vm195 = vcmp.eq.f32.partialorder %v186, inf
      %v196 = vsel %vm195, %v186, %v194
      %vm197 = vcmp.eq.f32.partialorder %v186, 0.0
      %v198 = vand.u32 %v186, 2147483648
      %v199 = vsel %vm197, %v198, %v196
      %v200 = vrsqrt.pop %v187
      %v201 = vmul.f32 %v187, %v200
      %vm202 = vcmp.eq.f32.partialorder %v187, inf
      %v203 = vsel %vm202, %v187, %v201
      %vm204 = vcmp.eq.f32.partialorder %v187, 0.0
      %v205 = vand.u32 %v187, 2147483648
      %v206 = vsel %vm204, %v205, %v203
      %v207 = vrsqrt.pop %v188
      %v208 = vmul.f32 %v188, %v207
      %vm209 = vcmp.eq.f32.partialorder %v188, inf
      %v210 = vsel %vm209, %v188, %v208
      %vm211 = vcmp.eq.f32.partialorder %v188, 0.0
      %v212 = vand.u32 %v188, 2147483648
      %v213 = vsel %vm211, %v212, %v210
      %v214 = vrsqrt.pop %v189
      %v215 = vmul.f32 %v189, %v214
      %vm216 = vcmp.eq.f32.partialorder %v189, inf
      %v217 = vsel %vm216, %v189, %v215
      %vm218 = vcmp.eq.f32.partialorder %v189, 0.0
      %v219 = vand.u32 %v189, 2147483648
      %v220 = vsel %vm218, %v219, %v217
      %v221 = vrsqrt.pop %v190
      %v222 = vmul.f32 %v190, %v221
      %vm223 = vcmp.eq.f32.partialorder %v190, inf
      %v224 = vsel %vm223, %v190, %v222
      %vm225 = vcmp.eq.f32.partialorder %v190, 0.0
      %v226 = vand.u32 %v190, 2147483648
      %v227 = vsel %vm225, %v226, %v224
      %v228 = vrsqrt.pop %v191
      %v229 = vmul.f32 %v191, %v228
      %vm230 = vcmp.eq.f32.partialorder %v191, inf
      %v231 = vsel %vm230, %v191, %v229
      %vm232 = vcmp.eq.f32.partialorder %v191, 0.0
      %v233 = vand.u32 %v191, 2147483648
      %v234 = vsel %vm232, %v233, %v231
      %v235 = vrsqrt.pop %v192
      %v236 = vmul.f32 %v192, %v235
      %vm237 = vcmp.eq.f32.partialorder %v192, inf
      %v238 = vsel %vm237, %v192, %v236
      %vm239 = vcmp.eq.f32.partialorder %v192, 0.0
      %v240 = vand.u32 %v192, 2147483648
      %v241 = vsel %vm239, %v240, %v238
      %v242 = vld [vmem:[#allocation3] sm:$0xff]
      %v243 = vld [vmem:[#allocation3 + $0x8] sm:$0xff]
      %v244 = vld [vmem:[#allocation3 + $0x10] sm:$0xff]
      %v245 = vld [vmem:[#allocation3 + $0x18] sm:$0xff]
      %v246 = vld [vmem:[#allocation3 + $0x20] sm:$0xff]
      %v247 = vld [vmem:[#allocation3 + $0x28] sm:$0xff]
      %v248 = vld [vmem:[#allocation3 + $0x30] sm:$0xff]
      %v249 = vrsqrt.pop %v242
      %v250 = vmul.f32 %v242, %v249
      %vm251 = vcmp.eq.f32.partialorder %v242, inf
      %v252 = vsel %vm251, %v242, %v250
      %vm253 = vcmp.eq.f32.partialorder %v242, 0.0
      %v254 = vand.u32 %v242, 2147483648
      %v255 = vsel %vm253, %v254, %v252
      %v256 = vrsqrt.pop %v243
      %v257 = vmul.f32 %v243, %v256
      %vm258 = vcmp.eq.f32.partialorder %v243, inf
      %v259 = vsel %vm258, %v243, %v257
      %vm260 = vcmp.eq.f32.partialorder %v243, 0.0
      %v261 = vand.u32 %v243, 2147483648
      %v262 = vsel %vm260, %v261, %v259
      %v263 = vrsqrt.pop %v244
      %v264 = vmul.f32 %v244, %v263
      %vm265 = vcmp.eq.f32.partialorder %v244, inf
      %v266 = vsel %vm265, %v244, %v264
      %vm267 = vcmp.eq.f32.partialorder %v244, 0.0
      %v268 = vand.u32 %v244, 2147483648
      %v269 = vsel %vm267, %v268, %v266
      %v270 = vrsqrt.pop %v245
      %v271 = vmul.f32 %v245, %v270
      %vm272 = vcmp.eq.f32.partialorder %v245, inf
      %v273 = vsel %vm272, %v245, %v271
      %vm274 = vcmp.eq.f32.partialorder %v245, 0.0
      %v275 = vand.u32 %v245, 2147483648
      %v276 = vsel %vm274, %v275, %v273
      %v277 = vrsqrt.pop %v246
      %v278 = vmul.f32 %v246, %v277
      %vm279 = vcmp.eq.f32.partialorder %v246, inf
      %v280 = vsel %vm279, %v246, %v278
      %vm281 = vcmp.eq.f32.partialorder %v246, 0.0
      %v282 = vand.u32 %v246, 2147483648
      %v283 = vsel %vm281, %v282, %v280
      %v284 = vrsqrt.pop %v247
      %v285 = vmul.f32 %v247, %v284
      %vm286 = vcmp.eq.f32.partialorder %v247, inf
      %v287 = vsel %vm286, %v247, %v285
      %vm288 = vcmp.eq.f32.partialorder %v247, 0.0
      %v289 = vand.u32 %v247, 2147483648
      %v290 = vsel %vm288, %v289, %v287
      %v291 = vrsqrt.pop %v248
      %v292 = vmul.f32 %v248, %v291
      %vm293 = vcmp.eq.f32.partialorder %v248, inf
      %v294 = vsel %vm293, %v248, %v292
      %vm295 = vcmp.eq.f32.partialorder %v248, 0.0
      %v296 = vand.u32 %v248, 2147483648
      %v297 = vsel %vm295, %v296, %v294
      %v298 = vsub.f32 %v199, %v255
      %v299 = vsub.f32 %v206, %v262
      %v300 = vsub.f32 %v213, %v269
      %v301 = vsub.f32 %v220, %v276
      %v302 = vsub.f32 %v227, %v283
      %v303 = vsub.f32 %v234, %v290
      %v304 = vsub.f32 %v241, %v297
      %v305 = vadd.f32 %v298, 2.0
      %v306 = vadd.f32 %v299, 2.0
      %v307 = vadd.f32 %v300, 2.0
      %v308 = vadd.f32 %v301, 2.0
      %v309 = vadd.f32 %v302, 2.0
      %v310 = vadd.f32 %v303, 2.0
      %v311 = vadd.f32 %v304, 2.0
      %v312 = vmax.f32 %v305, 0.0
      %v313 = vmax.f32 %v306, 0.0
      %v314 = vmax.f32 %v307, 0.0
      %v315 = vmax.f32 %v308, 0.0
      %v316 = vmax.f32 %v309, 0.0
      %v317 = vmax.f32 %v310, 0.0
      %v318 = vmax.f32 %v311, 0.0
      %v319 = vlaneseq
      %v320 = vshrl.u32 %v319, 7
      %v321 = vadd.s32 %v320, 8
      %v322 = vadd.s32 %v320, 16
      %v323 = vadd.s32 %v320, 24
      %v324 = vadd.s32 %v320, 32
      %v325 = vadd.s32 %v320, 40
      %v326 = vadd.s32 %v320, 48
      %s327 = smul.u32 0, 56
      %v328 = vstv %s327
      %v329 = vadd.s32 %v320, %v328
      %v330 = vadd.s32 %v321, %v328
      %v331 = vadd.s32 %v322, %v328
      %v332 = vadd.s32 %v323, %v328
      %v333 = vadd.s32 %v324, %v328
      %v334 = vadd.s32 %v325, %v328
      %v335 = vadd.s32 %v326, %v328
      %vm336 = vcmp.lt.s32.totalorder %v329, 50
      %vm337 = vcmp.lt.s32.totalorder %v330, 50
      %vm338 = vcmp.lt.s32.totalorder %v331, 50
      %vm339 = vcmp.lt.s32.totalorder %v332, 50
      %vm340 = vcmp.lt.s32.totalorder %v333, 50
      %vm341 = vcmp.lt.s32.totalorder %v334, 50
      %vm342 = vcmp.lt.s32.totalorder %v335, 50
      %v343 = vsel %vm336, %v312, 0.0
      %v344 = vsel %vm337, %v313, 0.0
      %v345 = vsel %vm338, %v314, 0.0
      %v346 = vsel %vm339, %v315, 0.0
      %v347 = vsel %vm340, %v316, 0.0
      %v348 = vsel %vm341, %v317, 0.0
      %v349 = vsel %vm342, %v318, 0.0
      %v350 = vsel %vm133, %v343, 0.0
      %v351 = vsel %vm133, %v344, 0.0
      %v352 = vadd.f32 %v350, %v351
      %v353 = vsel %vm133, %v345, 0.0
      %v354 = vadd.f32 %v352, %v353
      %v355 = vsel %vm133, %v346, 0.0
      %v356 = vadd.f32 %v354, %v355
      %v357 = vsel %vm133, %v347, 0.0
      %v358 = vadd.f32 %v356, %v357
      %v359 = vsel %vm133, %v348, 0.0
      %v360 = vadd.f32 %v358, %v359
      %v361 = vsel %vm133, %v349, 0.0
      %v362 = vadd.f32 %v360, %v361
      %363 = vadd.xlane.f32.xlu0 %v362
      %v364 = vpop.xlane.xlu0 %363
      %v365 = vrot.slane %v364, 4
      %v366 = vadd.f32 %v364, %v365
      %v367 = vrot.slane %v366, 2
      %v368 = vadd.f32 %v366, %v367
      %v369 = vrot.slane %v368, 1
      %v370 = vadd.f32 %v368, %v369
      %s371 = vtos %v370
      %v372 = vstv %s371
      %373 = vst [vmem:[#allocation4] sm:$0x1] %v372
    $region21: #{tpu_custom_call.1} parent=1 // pred_fallthru
      _
    // Predicated region
    $region22: #{tpu_custom_call.1} parent=1 // pred_check
      _
    $region23: #{tpu_custom_call.1} parent=1 // pred_check_branch
      %375 = sbr.rel (0) target = $region25
    $region24: #{tpu_custom_call.1} parent=1 // pred_region
      %s377 = ssub.s32 16, 16
      %378 = vsyncadd [#allocation5], %s377
      %s380 = sshll.u32 [#allocation4], 4
      %s381 = int_to_ptr.vmem [resolvable:$true] %s380
      %383 = dma.vmem_to_hbm [thread:$0]  %s381, 16, %s3, [#allocation5]
    $region25: #{tpu_custom_call.1} parent=1 // pred_fallthru
      _
    // Predicated region
    $region26: #{tpu_custom_call.1} parent=1 // pred_check
      _
    $region27: #{tpu_custom_call.1} parent=1 // pred_check_branch
      %385 = sbr.rel (0) target = $region29
    $region28: #{tpu_custom_call.1} parent=1 // pred_region
      %386 = dma.done [#allocation5], 16
    $region29: #{tpu_custom_call.1} parent=1 // pred_fallthru
      _
    %387 = vsyncpa [#allocation5], 1

</llo_original>
